<compile_context>
chip_gen: v6e
topology: v6e:2x2x1
jax: 0.10.0
libtpu: 0.0.40
codegen_flags: <defaults>
</compile_context>

<pallas_src>
import jax
import jax.numpy as jnp
from jax import lax
from jax.experimental import pallas as pl
from jax.experimental.pallas import tpu as pltpu


def _inception_kernel(x_ref, w_ref, o_ref):
    """One M-tile per grid step: a single long-K MXU matmul.

    x_ref : (TM, K_pad)      bf16  im2col rows (kh, wp, c flattened) + bias lane
    w_ref : (K_pad, N)       bf16  block-Toeplitz weight + bias row
    o_ref : (TM, N)          f32   lane-dense output (N = W * C_out)
    """
    o_ref[...] = jnp.dot(x_ref[...], w_ref[...],
                         preferred_element_type=jnp.float32).astype(o_ref.dtype)


def _pick_tile_m(M, target=256):
    """Largest multiple-of-8 divisor of M that is <= target (else M itself)."""
    if M <= target:
        return M
    start = target - (target % 8)
    for tm in range(start, 7, -8):
        if M % tm == 0:
            return tm
    return M


def inception_block_v1(x_nchw, weights, biases, num_kernels, *,
                       compute_dtype=jnp.bfloat16):
    """weights[i]: (C_out, C_in, k_i, k_i) with k_i = 2*i+1; biases[i]: (C_out,)."""
    B, C_in, H, W = x_nchw.shape
    C_out = weights[0].shape[0]
    KS = 2 * (num_kernels - 1) + 1          # largest kernel size (11 for K=6)
    PAD = num_kernels - 1                   # its "same" padding (5)
    Hp, Wp = H + 2 * PAD, W + 2 * PAD
    L = Wp * C_in                           # lanes per padded input row
    N = W * C_out                           # output lanes per row (128 here)
    K_raw = KS * L                          # full contraction (kh, wp, c)
    K_pad = ((K_raw + 1 + 127) // 128) * 128  # +1 bias lane, round up to 128

    # --- glue: merge the K kernels into one centered KSxKS kernel (mean) ---
    w_merged = jnp.zeros((C_out, C_in, KS, KS), jnp.float32)
    b_merged = jnp.zeros((C_out,), jnp.float32)
    for i in range(num_kernels):
        k = 2 * i + 1
        off = PAD - i
        w_merged = w_merged.at[:, :, off:off + k, off:off + k].add(weights[i])
        b_merged = b_merged + biases[i]
    w_merged = w_merged / num_kernels
    b_merged = b_merged / num_kernels

    # (C_out, C_in, KS, KS) -> (KS, KS, C_in, C_out) -> (KS, KS*C_in, C_out)
    w_hwio = jnp.transpose(w_merged, (2, 3, 1, 0))
    w_flat = w_hwio.reshape(KS, KS * C_in, C_out)

    # --- glue: block-Toeplitz along W so kw+C_in live in the contraction and
    #     output columns are lane-dense (W*C_out) ---
    #   w_toep[kh, (w+kw)*C_in + c, w*C_out + o] = w_hwio[kh, kw, c, o]
    cols = []
    for w in range(W):
        cols.append(jnp.pad(w_flat,
                            ((0, 0), (w * C_in, (W - 1 - w) * C_in), (0, 0))))
    w_toep = jnp.concatenate(cols, axis=2)              # (KS, Wp*C_in, W*C_out)

    # Fold kh into the contraction and append a bias row on the +1 pad lane.
    w_big = jnp.pad(w_toep.reshape(K_raw, N), ((0, K_pad - K_raw), (0, 0)))
    w_big = w_big.at[K_raw, :].set(jnp.tile(b_merged, (W,)))
    w_big = w_big.astype(compute_dtype)                  # (K_pad, N)

    # --- glue: pad spatially, NCHW -> NHWC, flatten (Wp, C_in) into lanes,
    #     unfold kh (im2col along H only), add the constant-1 bias lane ---
    x_pad = jnp.pad(x_nchw, ((0, 0), (0, 0), (PAD, PAD), (PAD, PAD)))
    x_nhwc = jnp.transpose(x_pad, (0, 2, 3, 1))          # (B, Hp, Wp, C_in)
    x_lanes = x_nhwc.reshape(B, Hp, L)                   # (B, Hp, L)
    x_unf = jnp.stack([x_lanes[:, kh:kh + H, :] for kh in range(KS)],
                      axis=2)                            # (B, H, KS, L)
    x_unf = x_unf.reshape(B * H, K_raw)
    x_big = jnp.pad(x_unf, ((0, 0), (0, K_pad - K_raw)))
    x_big = x_big.at[:, K_raw].set(1.0)                  # bias lane
    x_big = x_big.astype(compute_dtype)                  # (B*H, K_pad)

    # --- grid: tile the M dimension (rows) as large as possible for the MXU ---
    M = B * H
    TM = _pick_tile_m(M)                                 # = M (grid of 1) at test size
    assert M % TM == 0

    out = pl.pallas_call(
        _inception_kernel,
        out_shape=jax.ShapeDtypeStruct((M, N), jnp.float32),
        grid_spec=pltpu.PrefetchScalarGridSpec(
            num_scalar_prefetch=0,
            grid=(M // TM,),
            in_specs=[
                pl.BlockSpec((TM, K_pad), lambda i: (i, 0)),
                pl.BlockSpec((K_pad, N), lambda i: (0, 0)),
            ],
            out_specs=pl.BlockSpec((TM, N), lambda i: (i, 0)),
        ),
        compiler_params=pltpu.CompilerParams(
            dimension_semantics=("parallel",)),
    )(x_big, w_big)

    # (B*H, W*C_out) -> (B, H, W, C_out) -> NCHW (module convention).
    # TODO(synk): if the consumer accepts NHWC / bf16, skip this transpose and
    # emit bf16 directly to halve output writeback.
    out = out.reshape(B, H, W, C_out)
    return jnp.transpose(out, (0, 3, 1, 2))


def _reference_forward(x_nchw, weights, biases, num_kernels):
    """Pure-JAX reference (f32): K separate 'same' convs, stacked and averaged."""
    outs = []
    for i in range(num_kernels):
        pad = i
        y = lax.conv_general_dilated(
            x_nchw, weights[i],
            window_strides=(1, 1),
            padding=((pad, pad), (pad, pad)),
            dimension_numbers=("NCHW", "OIHW", "NCHW"))
        outs.append(y + biases[i][None, :, None, None])
    return jnp.stack(outs, axis=-1).mean(-1)


def _init_params(key, input_channel, output_channel, num_kernels):
    """Kaiming-normal (fan_out, relu) weights, zero bias — matches the module."""
    weights, biases = [], []
    for i in range(num_kernels):
        k = 2 * i + 1
        fan_out = output_channel * k * k
        std = (2.0 / fan_out) ** 0.5
        wkey = jax.random.fold_in(key, i)
        w = std * jax.random.normal(
            wkey, (output_channel, input_channel, k, k), jnp.float32)
        weights.append(w)
        biases.append(jnp.zeros((output_channel,), jnp.float32))
    return weights, biases


if __name__ == "__main__":
    B, C_in, C_out, H, W = 2, 4, 8, 16, 16
    NUM_KERNELS = 6

    key = jax.random.PRNGKey(0)
    xkey, pkey, bkey = jax.random.split(key, 3)
    x = jax.random.normal(xkey, (B, C_in, H, W), jnp.float32)
    weights, biases = _init_params(pkey, C_in, C_out, NUM_KERNELS)

    # Primary check: module-default parameters (zero bias).
    out = inception_block_v1(x, weights, biases, NUM_KERNELS)
    out = jax.block_until_ready(out)
    ref = _reference_forward(x, weights, biases, NUM_KERNELS)
    assert out.shape == (B, C_out, H, W)
    # Tolerance accounts for intentional bf16 rounding of MXU inputs
    # (accumulation stays f32 via preferred_element_type).
    assert jnp.allclose(out, ref, atol=2e-2, rtol=2e-2), "mismatch vs reference"

    # Secondary check: non-zero biases, to exercise the folded bias lane.
    biases_nz = [0.1 * jax.random.normal(jax.random.fold_in(bkey, i),
                                         (C_out,), jnp.float32)
                 for i in range(NUM_KERNELS)]
    out2 = jax.block_until_ready(
        inception_block_v1(x, weights, biases_nz, NUM_KERNELS))
    ref2 = _reference_forward(x, weights, biases_nz, NUM_KERNELS)
    assert jnp.allclose(out2, ref2, atol=2e-2, rtol=2e-2), "bias-path mismatch"

    print("KERNEL_OK")
</pallas_src>

<mosaic_0001>
module attributes {stable_mosaic.version = 11 : i64} {
  func.func @_inception_kernel(%arg0: i32, %arg1: memref<32x1152xbf16, #tpu.memory_space<vmem>>, %arg2: memref<1152x128xbf16, #tpu.memory_space<vmem>>, %arg3: memref<32x128xf32, #tpu.memory_space<vmem>>) attributes {dimension_semantics = [#tpu.dimension_semantics<parallel>], iteration_bounds = array<i64: 1>, scalar_prefetch = 0 : i64, scratch_operands = 0 : i64, tpu.core_type = #tpu.core_type<tc>, window_params = [{transform_indices = @transform_0, window_bounds = array<i64: 32, 1152>}, {pipeline_mode = #tpu.pipeline_mode<synchronous>, transform_indices = @transform_1, window_bounds = array<i64: 1152, 128>}, {transform_indices = @transform_2, window_bounds = array<i64: 32, 128>}]} {
    %c0 = arith.constant 0 : index
    %c0_0 = arith.constant 0 : index
    %0 = vector.load %arg1[%c0, %c0_0] : memref<32x1152xbf16, #tpu.memory_space<vmem>>, vector<32x1152xbf16>
    %c0_1 = arith.constant 0 : index
    %c0_2 = arith.constant 0 : index
    %1 = vector.load %arg2[%c0_1, %c0_2] : memref<1152x128xbf16, #tpu.memory_space<vmem>>, vector<1152x128xbf16>
    %cst = arith.constant dense<0.000000e+00> : vector<32x128xf32>
    %2 = tpu.matmul %0, %1, %cst {dimension_numbers = #tpu.dot_dimension_numbers<[1], [0], [0], [1], [0, 0, 1, 1], [], []>} : vector<32x1152xbf16>, vector<1152x128xbf16>, vector<32x128xf32> -> vector<32x128xf32>
    %c0_3 = arith.constant 0 : index
    %c0_4 = arith.constant 0 : index
    %3 = vector.load %arg3[%c0_3, %c0_4] : memref<32x128xf32, #tpu.memory_space<vmem>>, vector<32x128xf32>
    tpu.vector_store %arg3[%c0_3, %c0_4], %2 {strides = array<i32>} : memref<32x128xf32, #tpu.memory_space<vmem>>, vector<32x128xf32>,
    return
  }
  func.func @transform_0(%arg0: i32) -> (i32, i32) {
    %c0_i32 = arith.constant 0 : i32
    %c0_i32_0 = arith.constant 0 : i32
    return %arg0, %c0_i32 : i32, i32
  }
  func.func @transform_1(%arg0: i32) -> (i32, i32) {
    %c0_i32 = arith.constant 0 : i32
    %c0_i32_0 = arith.constant 0 : i32
    %c0_i32_1 = arith.constant 0 : i32
    return %c0_i32, %c0_i32_0 : i32, i32
  }
  func.func @transform_2(%arg0: i32) -> (i32, i32) {
    %c0_i32 = arith.constant 0 : i32
    %c0_i32_0 = arith.constant 0 : i32
    return %arg0, %c0_i32 : i32, i32
  }
}

</mosaic_0001>

<llo_original>
// kernel: tpu_custom_call.1
$region0: #{tpu_custom_call.1}
  #allocation0 [shape = 'u32[]', space=smem, size = 0x4, offset = 0x4, fixed_abs, tag = 'smem constant byte address 0x4 - core index']
  #allocation1 [shape = 'u32[144,128]{1,0:T(1,128)}', space=vmem, size = 0x12000, scoped, tag = 'internal scratch']
  %s0 = inlined_call_operand.hbm [shape: bf16[32,1152], index: 0, kind: input, shape index: {}]
  %s1 = inlined_call_operand.hbm [shape: bf16[1152,128], index: 1, kind: input, shape index: {}]
  %s2 = inlined_call_operand.hbm [shape: f32[32,128], index: 2, kind: output, shape index: {}]
  %s3 = sld [smem:[#allocation0]]
  $region26: #{tpu_custom_call.1} parent=0
    _
  %s5 = ssub.s32 1, %s3
  %s6 = scalar_select 0, %s5, %s3
  $region1: #{tpu_custom_call.1} parent=0
    #allocation2 [shape = 'u8[73728]{0}', space=vmem, size = 0x12000, scoped, tag = 'input window, operand 0, single buffered']
    #allocation3 [shape = 's32[1]{0}', space=sflag, size = 0x4, scoped, tag = 'scoped memory for tpu_custom_call.1']
    #allocation4 [shape = 's32[1]{0}', space=sflag, size = 0x4, scoped, tag = 'scoped memory for tpu_custom_call.1']
    #allocation5 [shape = 'u8[294912]{0}', space=vmem, size = 0x48000, scoped, tag = 'input window, operand 1, single buffered']
    #allocation6 [shape = 's32[1]{0}', space=sflag, size = 0x4, scoped, tag = 'scoped memory for tpu_custom_call.1']
    #allocation7 [shape = 'u8[16384]{0}', space=vmem, size = 0x4000, scoped, tag = 'output window, operand 0, single buffered']
    %7 = vsyncpa [#allocation3], 0
    %8 = vsyncpa [#allocation6], 0
    %9 = vsyncpa [#allocation4], 0
    // Predicated region
    $region2: #{tpu_custom_call.1} parent=1 // pred_check
      _
    $region3: #{tpu_custom_call.1} parent=1 // pred_check_branch
      %11 = sbr.rel (0) target = $region5
    $region4: #{tpu_custom_call.1} parent=1 // pred_region
      %s13 = ssub.s32 2304, 2304
      %14 = vsyncadd [#allocation3], %s13
      %s15 = sshll.u32 [#allocation2], 4
      %s16 = int_to_ptr.vmem [resolvable:$true] %s15
      %21 = dma.hbm_to_vmem [thread:$0]  %s0, 2304, %s16, [#allocation3], 576, 576, 36
    $region5: #{tpu_custom_call.1} parent=1 // pred_fallthru
      _
    // Predicated region
    $region6: #{tpu_custom_call.1} parent=1 // pred_check
      _
    $region7: #{tpu_custom_call.1} parent=1 // pred_check_branch
      %23 = sbr.rel (0) target = $region9
    $region8: #{tpu_custom_call.1} parent=1 // pred_region
      %s25 = ssub.s32 9216, 9216
      %26 = vsyncadd [#allocation6], %s25
      %s27 = sshll.u32 [#allocation5], 4
      %s28 = int_to_ptr.vmem [resolvable:$true] %s27
      %33 = dma.hbm_to_vmem [thread:$0]  %s1, 9216, %s28, [#allocation6], 64, 64, 4
    $region9: #{tpu_custom_call.1} parent=1 // pred_fallthru
      _
    // Predicated region
    $region10: #{tpu_custom_call.1} parent=1 // pred_check
      _
    $region11: #{tpu_custom_call.1} parent=1 // pred_check_branch
      %35 = sbr.rel (0) target = $region13
    $region12: #{tpu_custom_call.1} parent=1 // pred_region
      %36 = dma.done [#allocation3], 2304
    $region13: #{tpu_custom_call.1} parent=1 // pred_fallthru
      _
    // Predicated region
    $region14: #{tpu_custom_call.1} parent=1 // pred_check
      _
    $region15: #{tpu_custom_call.1} parent=1 // pred_check_branch
      %38 = sbr.rel (0) target = $region17
    $region16: #{tpu_custom_call.1} parent=1 // pred_region
      %39 = dma.done [#allocation6], 9216
    $region17: #{tpu_custom_call.1} parent=1 // pred_fallthru
      _
    %v41 = vld [vmem:[#allocation2] sm:$0xff]
    %v42 = vld [vmem:[#allocation2 + $0x8] sm:$0xff]
    %v43 = vld [vmem:[#allocation2 + $0x10] sm:$0xff]
    %v44 = vld [vmem:[#allocation2 + $0x18] sm:$0xff]
    %v45 = vld [vmem:[#allocation2 + $0x20] sm:$0xf]
    %v46 = vld [vmem:[#allocation2 + $0x24] sm:$0xff]
    %v47 = vld [vmem:[#allocation2 + $0x2c] sm:$0xff]
    %v48 = vld [vmem:[#allocation2 + $0x34] sm:$0xff]
    %v49 = vld [vmem:[#allocation2 + $0x3c] sm:$0xff]
    %v50 = vld [vmem:[#allocation2 + $0x44] sm:$0xf]
    %v51 = vld [vmem:[#allocation2 + $0x48] sm:$0xff]
    %v52 = vld [vmem:[#allocation2 + $0x50] sm:$0xff]
    %v53 = vld [vmem:[#allocation2 + $0x58] sm:$0xff]
    %v54 = vld [vmem:[#allocation2 + $0x60] sm:$0xff]
    %v55 = vld [vmem:[#allocation2 + $0x68] sm:$0xf]
    %v56 = vld [vmem:[#allocation2 + $0x6c] sm:$0xff]
    %v57 = vld [vmem:[#allocation2 + $0x74] sm:$0xff]
    %v58 = vld [vmem:[#allocation2 + $0x7c] sm:$0xff]
    %v59 = vld [vmem:[#allocation2 + $0x84] sm:$0xff]
    %v60 = vld [vmem:[#allocation2 + $0x8c] sm:$0xf]
    %v61 = vld [vmem:[#allocation5] sm:$0xf]
    %v62 = vld [vmem:[#allocation5 + $0x4] sm:$0xf]
    %v63 = vld [vmem:[#allocation5 + $0x8] sm:$0xf]
    %v64 = vld [vmem:[#allocation5 + $0xc] sm:$0xf]
    %v65 = vld [vmem:[#allocation5 + $0x10] sm:$0xf]
    %v66 = vld [vmem:[#allocation5 + $0x14] sm:$0xf]
    %v67 = vld [vmem:[#allocation5 + $0x18] sm:$0xf]
    %v68 = vld [vmem:[#allocation5 + $0x1c] sm:$0xf]
    %v69 = vld [vmem:[#allocation5 + $0x20] sm:$0xf]
    %v70 = vld [vmem:[#allocation5 + $0x24] sm:$0xf]
    %v71 = vld [vmem:[#allocation5 + $0x28] sm:$0xf]
    %v72 = vld [vmem:[#allocation5 + $0x2c] sm:$0xf]
    %v73 = vld [vmem:[#allocation5 + $0x30] sm:$0xf]
    %v74 = vld [vmem:[#allocation5 + $0x34] sm:$0xf]
    %v75 = vld [vmem:[#allocation5 + $0x38] sm:$0xf]
    %v76 = vld [vmem:[#allocation5 + $0x3c] sm:$0xf]
    %v77 = vld [vmem:[#allocation5 + $0x40] sm:$0xf]
    %v78 = vld [vmem:[#allocation5 + $0x44] sm:$0xf]
    %v79 = vld [vmem:[#allocation5 + $0x48] sm:$0xf]
    %v80 = vld [vmem:[#allocation5 + $0x4c] sm:$0xf]
    %v81 = vld [vmem:[#allocation5 + $0x50] sm:$0xf]
    %v82 = vld [vmem:[#allocation5 + $0x54] sm:$0xf]
    %v83 = vld [vmem:[#allocation5 + $0x58] sm:$0xf]
    %v84 = vld [vmem:[#allocation5 + $0x5c] sm:$0xf]
    %v85 = vld [vmem:[#allocation5 + $0x60] sm:$0xf]
    %v86 = vld [vmem:[#allocation5 + $0x64] sm:$0xf]
    %v87 = vld [vmem:[#allocation5 + $0x68] sm:$0xf]
    %v88 = vld [vmem:[#allocation5 + $0x6c] sm:$0xf]
    %v89 = vld [vmem:[#allocation5 + $0x70] sm:$0xf]
    %v90 = vld [vmem:[#allocation5 + $0x74] sm:$0xf]
    %v91 = vld [vmem:[#allocation5 + $0x78] sm:$0xf]
    %v92 = vld [vmem:[#allocation5 + $0x7c] sm:$0xf]
    %v93 = vld [vmem:[#allocation5 + $0x80] sm:$0xf]
    %v94 = vld [vmem:[#allocation5 + $0x84] sm:$0xf]
    %v95 = vld [vmem:[#allocation5 + $0x88] sm:$0xf]
    %v96 = vld [vmem:[#allocation5 + $0x8c] sm:$0xf]
    %v97 = vld [vmem:[#allocation5 + $0x90] sm:$0xf]
    %v98 = vld [vmem:[#allocation5 + $0x94] sm:$0xf]
    %v99 = vld [vmem:[#allocation5 + $0x98] sm:$0xf]
    %v100 = vld [vmem:[#allocation5 + $0x9c] sm:$0xf]
    %v101 = vld [vmem:[#allocation5 + $0xa0] sm:$0xf]
    %v102 = vld [vmem:[#allocation5 + $0xa4] sm:$0xf]
    %v103 = vld [vmem:[#allocation5 + $0xa8] sm:$0xf]
    %v104 = vld [vmem:[#allocation5 + $0xac] sm:$0xf]
    %v105 = vld [vmem:[#allocation5 + $0xb0] sm:$0xf]
    %v106 = vld [vmem:[#allocation5 + $0xb4] sm:$0xf]
    %v107 = vld [vmem:[#allocation5 + $0xb8] sm:$0xf]
    %v108 = vld [vmem:[#allocation5 + $0xbc] sm:$0xf]
    %v109 = vld [vmem:[#allocation5 + $0xc0] sm:$0xf]
    %v110 = vld [vmem:[#allocation5 + $0xc4] sm:$0xf]
    %v111 = vld [vmem:[#allocation5 + $0xc8] sm:$0xf]
    %v112 = vld [vmem:[#allocation5 + $0xcc] sm:$0xf]
    %v113 = vld [vmem:[#allocation5 + $0xd0] sm:$0xf]
    %v114 = vld [vmem:[#allocation5 + $0xd4] sm:$0xf]
    %v115 = vld [vmem:[#allocation5 + $0xd8] sm:$0xf]
    %v116 = vld [vmem:[#allocation5 + $0xdc] sm:$0xf]
    %v117 = vld [vmem:[#allocation5 + $0xe0] sm:$0xf]
    %v118 = vld [vmem:[#allocation5 + $0xe4] sm:$0xf]
    %v119 = vld [vmem:[#allocation5 + $0xe8] sm:$0xf]
    %v120 = vld [vmem:[#allocation5 + $0xec] sm:$0xf]
    %v121 = vld [vmem:[#allocation5 + $0xf0] sm:$0xf]
    %v122 = vld [vmem:[#allocation5 + $0xf4] sm:$0xf]
    %v123 = vld [vmem:[#allocation5 + $0xf8] sm:$0xf]
    %v124 = vld [vmem:[#allocation5 + $0xfc] sm:$0xf]
    %v125 = vld [vmem:[#allocation5 + $0x100] sm:$0xf]
    %v126 = vld [vmem:[#allocation5 + $0x104] sm:$0xf]
    %v127 = vld [vmem:[#allocation5 + $0x108] sm:$0xf]
    %v128 = vld [vmem:[#allocation5 + $0x10c] sm:$0xf]
    %v129 = vld [vmem:[#allocation5 + $0x110] sm:$0xf]
    %v130 = vld [vmem:[#allocation5 + $0x114] sm:$0xf]
    %v131 = vld [vmem:[#allocation5 + $0x118] sm:$0xf]
    %v132 = vld [vmem:[#allocation5 + $0x11c] sm:$0xf]
    %v133 = vld [vmem:[#allocation5 + $0x120] sm:$0xf]
    %v134 = vld [vmem:[#allocation5 + $0x124] sm:$0xf]
    %v135 = vld [vmem:[#allocation5 + $0x128] sm:$0xf]
    %v136 = vld [vmem:[#allocation5 + $0x12c] sm:$0xf]
    %v137 = vld [vmem:[#allocation5 + $0x130] sm:$0xf]
    %v138 = vld [vmem:[#allocation5 + $0x134] sm:$0xf]
    %v139 = vld [vmem:[#allocation5 + $0x138] sm:$0xf]
    %v140 = vld [vmem:[#allocation5 + $0x13c] sm:$0xf]
    %v141 = vld [vmem:[#allocation5 + $0x140] sm:$0xf]
    %v142 = vld [vmem:[#allocation5 + $0x144] sm:$0xf]
    %v143 = vld [vmem:[#allocation5 + $0x148] sm:$0xf]
    %v144 = vld [vmem:[#allocation5 + $0x14c] sm:$0xf]
    %v145 = vld [vmem:[#allocation5 + $0x150] sm:$0xf]
    %v146 = vld [vmem:[#allocation5 + $0x154] sm:$0xf]
    %v147 = vld [vmem:[#allocation5 + $0x158] sm:$0xf]
    %v148 = vld [vmem:[#allocation5 + $0x15c] sm:$0xf]
    %v149 = vld [vmem:[#allocation5 + $0x160] sm:$0xf]
    %v150 = vld [vmem:[#allocation5 + $0x164] sm:$0xf]
    %v151 = vld [vmem:[#allocation5 + $0x168] sm:$0xf]
    %v152 = vld [vmem:[#allocation5 + $0x16c] sm:$0xf]
    %v153 = vld [vmem:[#allocation5 + $0x170] sm:$0xf]
    %v154 = vld [vmem:[#allocation5 + $0x174] sm:$0xf]
    %v155 = vld [vmem:[#allocation5 + $0x178] sm:$0xf]
    %v156 = vld [vmem:[#allocation5 + $0x17c] sm:$0xf]
    %v157 = vld [vmem:[#allocation5 + $0x180] sm:$0xf]
    %v158 = vld [vmem:[#allocation5 + $0x184] sm:$0xf]
    %v159 = vld [vmem:[#allocation5 + $0x188] sm:$0xf]
    %v160 = vld [vmem:[#allocation5 + $0x18c] sm:$0xf]
    %v161 = vld [vmem:[#allocation5 + $0x190] sm:$0xf]
    %v162 = vld [vmem:[#allocation5 + $0x194] sm:$0xf]
    %v163 = vld [vmem:[#allocation5 + $0x198] sm:$0xf]
    %v164 = vld [vmem:[#allocation5 + $0x19c] sm:$0xf]
    %v165 = vld [vmem:[#allocation5 + $0x1a0] sm:$0xf]
    %v166 = vld [vmem:[#allocation5 + $0x1a4] sm:$0xf]
    %v167 = vld [vmem:[#allocation5 + $0x1a8] sm:$0xf]
    %v168 = vld [vmem:[#allocation5 + $0x1ac] sm:$0xf]
    %v169 = vld [vmem:[#allocation5 + $0x1b0] sm:$0xf]
    %v170 = vld [vmem:[#allocation5 + $0x1b4] sm:$0xf]
    %v171 = vld [vmem:[#allocation5 + $0x1b8] sm:$0xf]
    %v172 = vld [vmem:[#allocation5 + $0x1bc] sm:$0xf]
    %v173 = vld [vmem:[#allocation5 + $0x1c0] sm:$0xf]
    %v174 = vld [vmem:[#allocation5 + $0x1c4] sm:$0xf]
    %v175 = vld [vmem:[#allocation5 + $0x1c8] sm:$0xf]
    %v176 = vld [vmem:[#allocation5 + $0x1cc] sm:$0xf]
    %v177 = vld [vmem:[#allocation5 + $0x1d0] sm:$0xf]
    %v178 = vld [vmem:[#allocation5 + $0x1d4] sm:$0xf]
    %v179 = vld [vmem:[#allocation5 + $0x1d8] sm:$0xf]
    %v180 = vld [vmem:[#allocation5 + $0x1dc] sm:$0xf]
    %v181 = vld [vmem:[#allocation5 + $0x1e0] sm:$0xf]
    %v182 = vld [vmem:[#allocation5 + $0x1e4] sm:$0xf]
    %v183 = vld [vmem:[#allocation5 + $0x1e8] sm:$0xf]
    %v184 = vld [vmem:[#allocation5 + $0x1ec] sm:$0xf]
    %v185 = vld [vmem:[#allocation5 + $0x1f0] sm:$0xf]
    %v186 = vld [vmem:[#allocation5 + $0x1f4] sm:$0xf]
    %v187 = vld [vmem:[#allocation5 + $0x1f8] sm:$0xf]
    %v188 = vld [vmem:[#allocation5 + $0x1fc] sm:$0xf]
    %v189 = vld [vmem:[#allocation5 + $0x200] sm:$0xf]
    %v190 = vld [vmem:[#allocation5 + $0x204] sm:$0xf]
    %v191 = vld [vmem:[#allocation5 + $0x208] sm:$0xf]
    %v192 = vld [vmem:[#allocation5 + $0x20c] sm:$0xf]
    %v193 = vld [vmem:[#allocation5 + $0x210] sm:$0xf]
    %v194 = vld [vmem:[#allocation5 + $0x214] sm:$0xf]
    %v195 = vld [vmem:[#allocation5 + $0x218] sm:$0xf]
    %v196 = vld [vmem:[#allocation5 + $0x21c] sm:$0xf]
    %v197 = vld [vmem:[#allocation5 + $0x220] sm:$0xf]
    %v198 = vld [vmem:[#allocation5 + $0x224] sm:$0xf]
    %v199 = vld [vmem:[#allocation5 + $0x228] sm:$0xf]
    %v200 = vld [vmem:[#allocation5 + $0x22c] sm:$0xf]
    %v201 = vld [vmem:[#allocation5 + $0x230] sm:$0xf]
    %v202 = vld [vmem:[#allocation5 + $0x234] sm:$0xf]
    %v203 = vld [vmem:[#allocation5 + $0x238] sm:$0xf]
    %v204 = vld [vmem:[#allocation5 + $0x23c] sm:$0xf]
    %v225 = vunpack.c.l.b16 %v41
    %v226 = vunpack.c.h.b16 %v41
    %v227 = vunpack.c.l.b16 %v42
    %v228 = vunpack.c.h.b16 %v42
    %v229 = vunpack.c.l.b16 %v43
    %v230 = vunpack.c.h.b16 %v43
    %v231 = vunpack.c.l.b16 %v44
    %v232 = vunpack.c.h.b16 %v44
    %v233 = vunpack.c.l.b16 %v45
    %v234 = vunpack.c.l.b16 %v46
    %v235 = vunpack.c.h.b16 %v46
    %v236 = vunpack.c.l.b16 %v47
    %v237 = vunpack.c.h.b16 %v47
    %v238 = vunpack.c.l.b16 %v48
    %v239 = vunpack.c.h.b16 %v48
    %v240 = vunpack.c.l.b16 %v49
    %v241 = vunpack.c.h.b16 %v49
    %v242 = vunpack.c.l.b16 %v50
    %v243 = vunpack.c.l.b16 %v51
    %v244 = vunpack.c.h.b16 %v51
    %v245 = vunpack.c.l.b16 %v52
    %v246 = vunpack.c.h.b16 %v52
    %v247 = vunpack.c.l.b16 %v53
    %v248 = vunpack.c.h.b16 %v53
    %v249 = vunpack.c.l.b16 %v54
    %v250 = vunpack.c.h.b16 %v54
    %v251 = vunpack.c.l.b16 %v55
    %v252 = vunpack.c.l.b16 %v56
    %v253 = vunpack.c.h.b16 %v56
    %v254 = vunpack.c.l.b16 %v57
    %v255 = vunpack.c.h.b16 %v57
    %v256 = vunpack.c.l.b16 %v58
    %v257 = vunpack.c.h.b16 %v58
    %v258 = vunpack.c.l.b16 %v59
    %v259 = vunpack.c.h.b16 %v59
    %v260 = vunpack.c.l.b16 %v60
    %v261 = vpack.c.b16 %v234, %v225
    %v262 = vpack.c.b16 %v235, %v226
    %v263 = vpack.c.b16 %v236, %v227
    %v264 = vpack.c.b16 %v237, %v228
    %v265 = vpack.c.b16 %v238, %v229
    %v266 = vpack.c.b16 %v239, %v230
    %v267 = vpack.c.b16 %v240, %v231
    %v268 = vpack.c.b16 %v241, %v232
    %v269 = vpack.c.b16 %v242, %v233
    %v270 = vpack.c.b16 %v252, %v243
    %v271 = vpack.c.b16 %v253, %v244
    %v272 = vpack.c.b16 %v254, %v245
    %v273 = vpack.c.b16 %v255, %v246
    %v274 = vpack.c.b16 %v256, %v247
    %v275 = vpack.c.b16 %v257, %v248
    %v276 = vpack.c.b16 %v258, %v249
    %v277 = vpack.c.b16 %v259, %v250
    %v278 = vpack.c.b16 %v260, %v251
    %v441 = vunpack.c.l.b16 %v61
    %v442 = vunpack.c.l.b16 %v62
    %v443 = vunpack.c.l.b16 %v63
    %v444 = vunpack.c.l.b16 %v64
    %v445 = vunpack.c.l.b16 %v65
    %v446 = vunpack.c.l.b16 %v66
    %v447 = vunpack.c.l.b16 %v67
    %v448 = vunpack.c.l.b16 %v68
    %v449 = vunpack.c.l.b16 %v69
    %v450 = vunpack.c.l.b16 %v70
    %v451 = vunpack.c.l.b16 %v71
    %v452 = vunpack.c.l.b16 %v72
    %v453 = vunpack.c.l.b16 %v73
    %v454 = vunpack.c.l.b16 %v74
    %v455 = vunpack.c.l.b16 %v75
    %v456 = vunpack.c.l.b16 %v76
    %v457 = vunpack.c.l.b16 %v77
    %v458 = vunpack.c.l.b16 %v78
    %v459 = vunpack.c.l.b16 %v79
    %v460 = vunpack.c.l.b16 %v80
    %v461 = vunpack.c.l.b16 %v81
    %v462 = vunpack.c.l.b16 %v82
    %v463 = vunpack.c.l.b16 %v83
    %v464 = vunpack.c.l.b16 %v84
    %v465 = vunpack.c.l.b16 %v85
    %v466 = vunpack.c.l.b16 %v86
    %v467 = vunpack.c.l.b16 %v87
    %v468 = vunpack.c.l.b16 %v88
    %v469 = vunpack.c.l.b16 %v89
    %v470 = vunpack.c.l.b16 %v90
    %v471 = vunpack.c.l.b16 %v91
    %v472 = vunpack.c.l.b16 %v92
    %v473 = vunpack.c.l.b16 %v93
    %v474 = vunpack.c.l.b16 %v94
    %v475 = vunpack.c.l.b16 %v95
    %v476 = vunpack.c.l.b16 %v96
    %v477 = vunpack.c.l.b16 %v97
    %v478 = vunpack.c.l.b16 %v98
    %v479 = vunpack.c.l.b16 %v99
    %v480 = vunpack.c.l.b16 %v100
    %v481 = vunpack.c.l.b16 %v101
    %v482 = vunpack.c.l.b16 %v102
    %v483 = vunpack.c.l.b16 %v103
    %v484 = vunpack.c.l.b16 %v104
    %v485 = vunpack.c.l.b16 %v105
    %v486 = vunpack.c.l.b16 %v106
    %v487 = vunpack.c.l.b16 %v107
    %v488 = vunpack.c.l.b16 %v108
    %v489 = vunpack.c.l.b16 %v109
    %v490 = vunpack.c.l.b16 %v110
    %v491 = vunpack.c.l.b16 %v111
    %v492 = vunpack.c.l.b16 %v112
    %v493 = vunpack.c.l.b16 %v113
    %v494 = vunpack.c.l.b16 %v114
    %v495 = vunpack.c.l.b16 %v115
    %v496 = vunpack.c.l.b16 %v116
    %v497 = vunpack.c.l.b16 %v117
    %v498 = vunpack.c.l.b16 %v118
    %v499 = vunpack.c.l.b16 %v119
    %v500 = vunpack.c.l.b16 %v120
    %v501 = vunpack.c.l.b16 %v121
    %v502 = vunpack.c.l.b16 %v122
    %v503 = vunpack.c.l.b16 %v123
    %v504 = vunpack.c.l.b16 %v124
    %v505 = vunpack.c.l.b16 %v125
    %v506 = vunpack.c.l.b16 %v126
    %v507 = vunpack.c.l.b16 %v127
    %v508 = vunpack.c.l.b16 %v128
    %v509 = vunpack.c.l.b16 %v129
    %v510 = vunpack.c.l.b16 %v130
    %v511 = vunpack.c.l.b16 %v131
    %v512 = vunpack.c.l.b16 %v132
    %v513 = vunpack.c.l.b16 %v133
    %v514 = vunpack.c.l.b16 %v134
    %v515 = vunpack.c.l.b16 %v135
    %v516 = vunpack.c.l.b16 %v136
    %v517 = vunpack.c.l.b16 %v137
    %v518 = vunpack.c.l.b16 %v138
    %v519 = vunpack.c.l.b16 %v139
    %v520 = vunpack.c.l.b16 %v140
    %v521 = vunpack.c.l.b16 %v141
    %v522 = vunpack.c.l.b16 %v142
    %v523 = vunpack.c.l.b16 %v143
    %v524 = vunpack.c.l.b16 %v144
    %v525 = vunpack.c.l.b16 %v145
    %v526 = vunpack.c.l.b16 %v146
    %v527 = vunpack.c.l.b16 %v147
    %v528 = vunpack.c.l.b16 %v148
    %v529 = vunpack.c.l.b16 %v149
    %v530 = vunpack.c.l.b16 %v150
    %v531 = vunpack.c.l.b16 %v151
    %v532 = vunpack.c.l.b16 %v152
    %v533 = vunpack.c.l.b16 %v153
    %v534 = vunpack.c.l.b16 %v154
    %v535 = vunpack.c.l.b16 %v155
    %v536 = vunpack.c.l.b16 %v156
    %v537 = vunpack.c.l.b16 %v157
    %v538 = vunpack.c.l.b16 %v158
    %v539 = vunpack.c.l.b16 %v159
    %v540 = vunpack.c.l.b16 %v160
    %v541 = vunpack.c.l.b16 %v161
    %v542 = vunpack.c.l.b16 %v162
    %v543 = vunpack.c.l.b16 %v163
    %v544 = vunpack.c.l.b16 %v164
    %v545 = vunpack.c.l.b16 %v165
    %v546 = vunpack.c.l.b16 %v166
    %v547 = vunpack.c.l.b16 %v167
    %v548 = vunpack.c.l.b16 %v168
    %v549 = vunpack.c.l.b16 %v169
    %v550 = vunpack.c.l.b16 %v170
    %v551 = vunpack.c.l.b16 %v171
    %v552 = vunpack.c.l.b16 %v172
    %v553 = vunpack.c.l.b16 %v173
    %v554 = vunpack.c.l.b16 %v174
    %v555 = vunpack.c.l.b16 %v175
    %v556 = vunpack.c.l.b16 %v176
    %v557 = vunpack.c.l.b16 %v177
    %v558 = vunpack.c.l.b16 %v178
    %v559 = vunpack.c.l.b16 %v179
    %v560 = vunpack.c.l.b16 %v180
    %v561 = vunpack.c.l.b16 %v181
    %v562 = vunpack.c.l.b16 %v182
    %v563 = vunpack.c.l.b16 %v183
    %v564 = vunpack.c.l.b16 %v184
    %v565 = vunpack.c.l.b16 %v185
    %v566 = vunpack.c.l.b16 %v186
    %v567 = vunpack.c.l.b16 %v187
    %v568 = vunpack.c.l.b16 %v188
    %v569 = vunpack.c.l.b16 %v189
    %v570 = vunpack.c.l.b16 %v190
    %v571 = vunpack.c.l.b16 %v191
    %v572 = vunpack.c.l.b16 %v192
    %v573 = vunpack.c.l.b16 %v193
    %v574 = vunpack.c.l.b16 %v194
    %v575 = vunpack.c.l.b16 %v195
    %v576 = vunpack.c.l.b16 %v196
    %v577 = vunpack.c.l.b16 %v197
    %v578 = vunpack.c.l.b16 %v198
    %v579 = vunpack.c.l.b16 %v199
    %v580 = vunpack.c.l.b16 %v200
    %v581 = vunpack.c.l.b16 %v201
    %v582 = vunpack.c.l.b16 %v202
    %v583 = vunpack.c.l.b16 %v203
    %v584 = vunpack.c.l.b16 %v204
    %v585 = vpack.c.b16 %v442, %v441
    %v586 = vpack.c.b16 %v444, %v443
    %v587 = vpack.c.b16 %v446, %v445
    %v588 = vpack.c.b16 %v448, %v447
    %v589 = vpack.c.b16 %v450, %v449
    %v590 = vpack.c.b16 %v452, %v451
    %v591 = vpack.c.b16 %v454, %v453
    %v592 = vpack.c.b16 %v456, %v455
    %v593 = vpack.c.b16 %v458, %v457
    %v594 = vpack.c.b16 %v460, %v459
    %v595 = vpack.c.b16 %v462, %v461
    %v596 = vpack.c.b16 %v464, %v463
    %v597 = vpack.c.b16 %v466, %v465
    %v598 = vpack.c.b16 %v468, %v467
    %v599 = vpack.c.b16 %v470, %v469
    %v600 = vpack.c.b16 %v472, %v471
    %v601 = vpack.c.b16 %v474, %v473
    %v602 = vpack.c.b16 %v476, %v475
    %v603 = vpack.c.b16 %v478, %v477
    %v604 = vpack.c.b16 %v480, %v479
    %v605 = vpack.c.b16 %v482, %v481
    %v606 = vpack.c.b16 %v484, %v483
    %v607 = vpack.c.b16 %v486, %v485
    %v608 = vpack.c.b16 %v488, %v487
    %v609 = vpack.c.b16 %v490, %v489
    %v610 = vpack.c.b16 %v492, %v491
    %v611 = vpack.c.b16 %v494, %v493
    %v612 = vpack.c.b16 %v496, %v495
    %v613 = vpack.c.b16 %v498, %v497
    %v614 = vpack.c.b16 %v500, %v499
    %v615 = vpack.c.b16 %v502, %v501
    %v616 = vpack.c.b16 %v504, %v503
    %v617 = vpack.c.b16 %v506, %v505
    %v618 = vpack.c.b16 %v508, %v507
    %v619 = vpack.c.b16 %v510, %v509
    %v620 = vpack.c.b16 %v512, %v511
    %v621 = vpack.c.b16 %v514, %v513
    %v622 = vpack.c.b16 %v516, %v515
    %v623 = vpack.c.b16 %v518, %v517
    %v624 = vpack.c.b16 %v520, %v519
    %v625 = vpack.c.b16 %v522, %v521
    %v626 = vpack.c.b16 %v524, %v523
    %v627 = vpack.c.b16 %v526, %v525
    %v628 = vpack.c.b16 %v528, %v527
    %v629 = vpack.c.b16 %v530, %v529
    %v630 = vpack.c.b16 %v532, %v531
    %v631 = vpack.c.b16 %v534, %v533
    %v632 = vpack.c.b16 %v536, %v535
    %v633 = vpack.c.b16 %v538, %v537
    %v634 = vpack.c.b16 %v540, %v539
    %v635 = vpack.c.b16 %v542, %v541
    %v636 = vpack.c.b16 %v544, %v543
    %v637 = vpack.c.b16 %v546, %v545
    %v638 = vpack.c.b16 %v548, %v547
    %v639 = vpack.c.b16 %v550, %v549
    %v640 = vpack.c.b16 %v552, %v551
    %v641 = vpack.c.b16 %v554, %v553
    %v642 = vpack.c.b16 %v556, %v555
    %v643 = vpack.c.b16 %v558, %v557
    %v644 = vpack.c.b16 %v560, %v559
    %v645 = vpack.c.b16 %v562, %v561
    %v646 = vpack.c.b16 %v564, %v563
    %v647 = vpack.c.b16 %v566, %v565
    %v648 = vpack.c.b16 %v568, %v567
    %v649 = vpack.c.b16 %v570, %v569
    %v650 = vpack.c.b16 %v572, %v571
    %v651 = vpack.c.b16 %v574, %v573
    %v652 = vpack.c.b16 %v576, %v575
    %v653 = vpack.c.b16 %v578, %v577
    %v654 = vpack.c.b16 %v580, %v579
    %v655 = vpack.c.b16 %v582, %v581
    %v656 = vpack.c.b16 %v584, %v583
    %729 = vmatprep.subr.bf16.mxu0 0
    %730 = vmatpush1.bf16.msra.mxu0 %v592
    %731 = vmatprep.subr.bf16.mxu0 0
    %732 = vmatpush1.bf16.msra.mxu0 %v591
    %733 = vmatprep.subr.bf16.mxu0 0
    %734 = vmatpush1.bf16.msra.mxu0 %v590
    %735 = vmatprep.subr.bf16.mxu0 0
    %736 = vmatpush1.bf16.msra.mxu0 %v589
    %737 = vmatprep.subr.bf16.mxu0 0
    %738 = vmatpush1.bf16.msra.mxu0 %v588
    %739 = vmatprep.subr.bf16.mxu0 0
    %740 = vmatpush1.bf16.msra.mxu0 %v587
    %741 = vmatprep.subr.bf16.mxu0 0
    %742 = vmatpush1.bf16.msra.mxu0 %v586
    %743 = vmatprep.subr.bf16.mxu0 0
    %744 = vmatpush1.bf16.msra.mxu0 %v585
    %745 = vmatprep.subr.bf16.mxu0 0
    %746 = vmatpush2.bf16.msra.mxu0 %v600
    %747 = vmatprep.subr.bf16.mxu0 0
    %748 = vmatpush2.bf16.msra.mxu0 %v599
    %749 = vmatprep.subr.bf16.mxu0 0
    %750 = vmatpush2.bf16.msra.mxu0 %v598
    %751 = vmatprep.subr.bf16.mxu0 0
    %752 = vmatpush2.bf16.msra.mxu0 %v597
    %753 = vmatprep.subr.bf16.mxu0 0
    %754 = vmatpush2.bf16.msra.mxu0 %v596
    %755 = vmatprep.subr.bf16.mxu0 0
    %756 = vmatpush2.bf16.msra.mxu0 %v595
    %757 = vmatprep.subr.bf16.mxu0 0
    %758 = vmatpush2.bf16.msra.mxu0 %v594
    %759 = vmatprep.subr.bf16.mxu0 0
    %760 = vmatpush2.bf16.msra.mxu0 %v593
    %761 = vmatprep.mubr.bf16.mxu0 %v262
    %762 = vmatmul.mubr.bf16.gmra.mxu0 %v261
    %v763 = vpop.f32.mrf.mxu0
    %v764 = vadd.f32 0.0, %v763
    %v765 = vpop.f32.mrf.mxu0
    %v766 = vpop.f32.mrf.mxu0
    %v767 = vadd.f32 0.0, %v766
    %v768 = vpop.f32.mrf.mxu0
    %769 = vmatprep.mubr.bf16.mxu0 %v271
    %770 = vmatmul.mubr.bf16.gmra.mxu0 %v270
    %v771 = vpop.f32.mrf.mxu0
    %v772 = vadd.f32 0.0, %v771
    %v773 = vpop.f32.mrf.mxu0
    %v774 = vpop.f32.mrf.mxu0
    %v775 = vadd.f32 0.0, %v774
    %v776 = vpop.f32.mrf.mxu0
    %777 = vdwg.mxu0
    %778 = vmatprep.subr.bf16.mxu0 0
    %779 = vmatpush1.bf16.msra.mxu0 %v608
    %780 = vmatprep.subr.bf16.mxu0 0
    %781 = vmatpush1.bf16.msra.mxu0 %v607
    %782 = vmatprep.subr.bf16.mxu0 0
    %783 = vmatpush1.bf16.msra.mxu0 %v606
    %784 = vmatprep.subr.bf16.mxu0 0
    %785 = vmatpush1.bf16.msra.mxu0 %v605
    %786 = vmatprep.subr.bf16.mxu0 0
    %787 = vmatpush1.bf16.msra.mxu0 %v604
    %788 = vmatprep.subr.bf16.mxu0 0
    %789 = vmatpush1.bf16.msra.mxu0 %v603
    %790 = vmatprep.subr.bf16.mxu0 0
    %791 = vmatpush1.bf16.msra.mxu0 %v602
    %792 = vmatprep.subr.bf16.mxu0 0
    %793 = vmatpush1.bf16.msra.mxu0 %v601
    %794 = vmatprep.subr.bf16.mxu0 0
    %795 = vmatpush2.bf16.msra.mxu0 %v616
    %796 = vmatprep.subr.bf16.mxu0 0
    %797 = vmatpush2.bf16.msra.mxu0 %v615
    %798 = vmatprep.subr.bf16.mxu0 0
    %799 = vmatpush2.bf16.msra.mxu0 %v614
    %800 = vmatprep.subr.bf16.mxu0 0
    %801 = vmatpush2.bf16.msra.mxu0 %v613
    %802 = vmatprep.subr.bf16.mxu0 0
    %803 = vmatpush2.bf16.msra.mxu0 %v612
    %804 = vmatprep.subr.bf16.mxu0 0
    %805 = vmatpush2.bf16.msra.mxu0 %v611
    %806 = vmatprep.subr.bf16.mxu0 0
    %807 = vmatpush2.bf16.msra.mxu0 %v610
    %808 = vmatprep.subr.bf16.mxu0 0
    %809 = vmatpush2.bf16.msra.mxu0 %v609
    %810 = vmatprep.mubr.bf16.mxu0 %v264
    %811 = vmatmul.mubr.bf16.gmra.mxu0 %v263
    %v812 = vpop.f32.mrf.mxu0
    %v813 = vadd.f32 %v764, %v812
    %v814 = vpop.f32.mrf.mxu0
    %v815 = vpop.f32.mrf.mxu0
    %v816 = vadd.f32 %v767, %v815
    %v817 = vpop.f32.mrf.mxu0
    %818 = vmatprep.mubr.bf16.mxu0 %v273
    %819 = vmatmul.mubr.bf16.gmra.mxu0 %v272
    %v820 = vpop.f32.mrf.mxu0
    %v821 = vadd.f32 %v772, %v820
    %v822 = vpop.f32.mrf.mxu0
    %v823 = vpop.f32.mrf.mxu0
    %v824 = vadd.f32 %v775, %v823
    %v825 = vpop.f32.mrf.mxu0
    %826 = vdwg.mxu0
    %827 = vmatprep.subr.bf16.mxu0 0
    %828 = vmatpush1.bf16.msra.mxu0 %v624
    %829 = vmatprep.subr.bf16.mxu0 0
    %830 = vmatpush1.bf16.msra.mxu0 %v623
    %831 = vmatprep.subr.bf16.mxu0 0
    %832 = vmatpush1.bf16.msra.mxu0 %v622
    %833 = vmatprep.subr.bf16.mxu0 0
    %834 = vmatpush1.bf16.msra.mxu0 %v621
    %835 = vmatprep.subr.bf16.mxu0 0
    %836 = vmatpush1.bf16.msra.mxu0 %v620
    %837 = vmatprep.subr.bf16.mxu0 0
    %838 = vmatpush1.bf16.msra.mxu0 %v619
    %839 = vmatprep.subr.bf16.mxu0 0
    %840 = vmatpush1.bf16.msra.mxu0 %v618
    %841 = vmatprep.subr.bf16.mxu0 0
    %842 = vmatpush1.bf16.msra.mxu0 %v617
    %843 = vmatprep.subr.bf16.mxu0 0
    %844 = vmatpush2.bf16.msra.mxu0 %v632
    %845 = vmatprep.subr.bf16.mxu0 0
    %846 = vmatpush2.bf16.msra.mxu0 %v631
    %847 = vmatprep.subr.bf16.mxu0 0
    %848 = vmatpush2.bf16.msra.mxu0 %v630
    %849 = vmatprep.subr.bf16.mxu0 0
    %850 = vmatpush2.bf16.msra.mxu0 %v629
    %851 = vmatprep.subr.bf16.mxu0 0
    %852 = vmatpush2.bf16.msra.mxu0 %v628
    %853 = vmatprep.subr.bf16.mxu0 0
    %854 = vmatpush2.bf16.msra.mxu0 %v627
    %855 = vmatprep.subr.bf16.mxu0 0
    %856 = vmatpush2.bf16.msra.mxu0 %v626
    %857 = vmatprep.subr.bf16.mxu0 0
    %858 = vmatpush2.bf16.msra.mxu0 %v625
    %859 = vmatprep.mubr.bf16.mxu0 %v266
    %860 = vmatmul.mubr.bf16.gmra.mxu0 %v265
    %v861 = vpop.f32.mrf.mxu0
    %v862 = vadd.f32 %v813, %v861
    %v863 = vpop.f32.mrf.mxu0
    %v864 = vpop.f32.mrf.mxu0
    %v865 = vadd.f32 %v816, %v864
    %v866 = vpop.f32.mrf.mxu0
    %867 = vmatprep.mubr.bf16.mxu0 %v275
    %868 = vmatmul.mubr.bf16.gmra.mxu0 %v274
    %v869 = vpop.f32.mrf.mxu0
    %v870 = vadd.f32 %v821, %v869
    %v871 = vpop.f32.mrf.mxu0
    %v872 = vpop.f32.mrf.mxu0
    %v873 = vadd.f32 %v824, %v872
    %v874 = vpop.f32.mrf.mxu0
    %875 = vdwg.mxu0
    %876 = vmatprep.subr.bf16.mxu0 0
    %877 = vmatpush1.bf16.msra.mxu0 %v640
    %878 = vmatprep.subr.bf16.mxu0 0
    %879 = vmatpush1.bf16.msra.mxu0 %v639
    %880 = vmatprep.subr.bf16.mxu0 0
    %881 = vmatpush1.bf16.msra.mxu0 %v638
    %882 = vmatprep.subr.bf16.mxu0 0
    %883 = vmatpush1.bf16.msra.mxu0 %v637
    %884 = vmatprep.subr.bf16.mxu0 0
    %885 = vmatpush1.bf16.msra.mxu0 %v636
    %886 = vmatprep.subr.bf16.mxu0 0
    %887 = vmatpush1.bf16.msra.mxu0 %v635
    %888 = vmatprep.subr.bf16.mxu0 0
    %889 = vmatpush1.bf16.msra.mxu0 %v634
    %890 = vmatprep.subr.bf16.mxu0 0
    %891 = vmatpush1.bf16.msra.mxu0 %v633
    %892 = vmatprep.subr.bf16.mxu0 0
    %893 = vmatpush2.bf16.msra.mxu0 %v648
    %894 = vmatprep.subr.bf16.mxu0 0
    %895 = vmatpush2.bf16.msra.mxu0 %v647
    %896 = vmatprep.subr.bf16.mxu0 0
    %897 = vmatpush2.bf16.msra.mxu0 %v646
    %898 = vmatprep.subr.bf16.mxu0 0
    %899 = vmatpush2.bf16.msra.mxu0 %v645
    %900 = vmatprep.subr.bf16.mxu0 0
    %901 = vmatpush2.bf16.msra.mxu0 %v644
    %902 = vmatprep.subr.bf16.mxu0 0
    %903 = vmatpush2.bf16.msra.mxu0 %v643
    %904 = vmatprep.subr.bf16.mxu0 0
    %905 = vmatpush2.bf16.msra.mxu0 %v642
    %906 = vmatprep.subr.bf16.mxu0 0
    %907 = vmatpush2.bf16.msra.mxu0 %v641
    %908 = vmatprep.mubr.bf16.mxu0 %v268
    %909 = vmatmul.mubr.bf16.gmra.mxu0 %v267
    %v910 = vpop.f32.mrf.mxu0
    %v911 = vadd.f32 %v862, %v910
    %v912 = vpop.f32.mrf.mxu0
    %v913 = vpop.f32.mrf.mxu0
    %v914 = vadd.f32 %v865, %v913
    %v915 = vpop.f32.mrf.mxu0
    %916 = vmatprep.mubr.bf16.mxu0 %v277
    %917 = vmatmul.mubr.bf16.gmra.mxu0 %v276
    %v918 = vpop.f32.mrf.mxu0
    %v919 = vadd.f32 %v870, %v918
    %v920 = vpop.f32.mrf.mxu0
    %v921 = vpop.f32.mrf.mxu0
    %v922 = vadd.f32 %v873, %v921
    %v923 = vpop.f32.mrf.mxu0
    %924 = vdwg.mxu0
    %925 = vmatprep.subr.bf16.mxu0 0
    %926 = vmatpush1.bf16.msra.mxu0 %v656
    %927 = vmatprep.subr.bf16.mxu0 0
    %928 = vmatpush1.bf16.msra.mxu0 %v655
    %929 = vmatprep.subr.bf16.mxu0 0
    %930 = vmatpush1.bf16.msra.mxu0 %v654
    %931 = vmatprep.subr.bf16.mxu0 0
    %932 = vmatpush1.bf16.msra.mxu0 %v653
    %933 = vmatprep.subr.bf16.mxu0 0
    %934 = vmatpush1.bf16.msra.mxu0 %v652
    %935 = vmatprep.subr.bf16.mxu0 0
    %936 = vmatpush1.bf16.msra.mxu0 %v651
    %937 = vmatprep.subr.bf16.mxu0 0
    %938 = vmatpush1.bf16.msra.mxu0 %v650
    %939 = vmatprep.subr.bf16.mxu0 0
    %940 = vmatpush1.bf16.msra.mxu0 %v649
    %941 = vmatprep.subr.bf16.mxu0 0
    %942 = vmatpush2.bf16.msra.mxu0 0
    %943 = vmatprep.subr.bf16.mxu0 0
    %944 = vmatpush2.bf16.msra.mxu0 0
    %945 = vmatprep.subr.bf16.mxu0 0
    %946 = vmatpush2.bf16.msra.mxu0 0
    %947 = vmatprep.subr.bf16.mxu0 0
    %948 = vmatpush2.bf16.msra.mxu0 0
    %949 = vmatprep.subr.bf16.mxu0 0
    %950 = vmatpush2.bf16.msra.mxu0 0
    %951 = vmatprep.subr.bf16.mxu0 0
    %952 = vmatpush2.bf16.msra.mxu0 0
    %953 = vmatprep.subr.bf16.mxu0 0
    %954 = vmatpush2.bf16.msra.mxu0 0
    %955 = vmatprep.subr.bf16.mxu0 0
    %956 = vmatpush2.bf16.msra.mxu0 0
    %957 = vmatprep.mubr.bf16.mxu0 0
    %958 = vmatmul.mubr.bf16.gmra.mxu0 %v269
    %v959 = vpop.f32.mrf.mxu0
    %v960 = vadd.f32 %v911, %v959
    %v961 = vpop.f32.mrf.mxu0
    %v962 = vpop.f32.mrf.mxu0
    %v963 = vadd.f32 %v914, %v962
    %v964 = vpop.f32.mrf.mxu0
    %965 = vmatprep.mubr.bf16.mxu0 0
    %966 = vmatmul.mubr.bf16.gmra.mxu0 %v278
    %v967 = vpop.f32.mrf.mxu0
    %v968 = vadd.f32 %v919, %v967
    %v969 = vpop.f32.mrf.mxu0
    %v970 = vpop.f32.mrf.mxu0
    %v971 = vadd.f32 %v922, %v970
    %v972 = vpop.f32.mrf.mxu0
    %973 = vdwg.mxu0
    %974 = vst [vmem:[#allocation7] sm:$0xff] %v960
    %975 = vst [vmem:[#allocation7 + $0x8] sm:$0xff] %v963
    %976 = vst [vmem:[#allocation7 + $0x10] sm:$0xff] %v968
    %977 = vst [vmem:[#allocation7 + $0x18] sm:$0xff] %v971
    // Predicated region
    $region18: #{tpu_custom_call.1} parent=1 // pred_check
      _
    $region19: #{tpu_custom_call.1} parent=1 // pred_check_branch
      %979 = sbr.rel (0) target = $region21
    $region20: #{tpu_custom_call.1} parent=1 // pred_region
      %s981 = ssub.s32 512, 512
      %982 = vsyncadd [#allocation4], %s981
      %s983 = sshll.u32 [#allocation7], 4
      %s984 = int_to_ptr.vmem [resolvable:$true] %s983
      %989 = dma.vmem_to_hbm [thread:$0]  %s984, 512, %s2, [#allocation4], 128, 128, 8
    $region21: #{tpu_custom_call.1} parent=1 // pred_fallthru
      _
    // Predicated region
    $region22: #{tpu_custom_call.1} parent=1 // pred_check
      _
    $region23: #{tpu_custom_call.1} parent=1 // pred_check_branch
      %991 = sbr.rel (0) target = $region25
    $region24: #{tpu_custom_call.1} parent=1 // pred_region
      %992 = dma.done [#allocation4], 512
    $region25: #{tpu_custom_call.1} parent=1 // pred_fallthru
      _
    %993 = vsyncpa [#allocation3], 1
    %994 = vsyncpa [#allocation6], 1
    %995 = vsyncpa [#allocation4], 1

</llo_original>
